<compile_context>
chip_gen: v5e
topology: v5e:2x2
jax: 0.10.0
libtpu: 0.0.40
codegen_flags: <defaults>
</compile_context>

<pallas_src>
import functools

import jax
import jax.numpy as jnp
import numpy as np
from jax.experimental import pallas as pl
from jax.experimental.pallas import tpu as pltpu

_LANES = 128
_SUBLANES = 8
_BLOCK_VMEM_BUDGET = 8 * 1024 * 1024      # bytes of double-buffered block traffic / step
_VMEM_LIMIT_BYTES = 32 * 1024 * 1024      # scoped VMEM limit (safe on v5e/v6e/v7x)


def _weighted_sum_kernel(w_ref, x_ref, o_ref, *, num_tasks):
    """o = sum_t w[t] * x[t] for one (th, 128) block of the flattened losses."""
    acc = w_ref[0] * x_ref[0].astype(jnp.float32)
    for t in range(1, num_tasks):          # static, small task count -> unrolled FMAs
        acc = acc + w_ref[t] * x_ref[t].astype(jnp.float32)
    o_ref[...] = acc.astype(o_ref.dtype)


def _pick_block_rows(num_tasks, H, W):
    """Largest th (multiple of 8, dividing H) whose blocks fit the VMEM budget."""
    best = None
    for th in range(_SUBLANES, H + 1, _SUBLANES):
        if H % th:
            continue
        # input block (T, th, W) + output block (th, W), f32, double-buffered.
        cost = 4 * 2 * (num_tasks + 1) * th * W
        if cost <= _BLOCK_VMEM_BUDGET:
            best = th
    return best if best is not None else _SUBLANES


def task_weighted_loss(task_weights, task_losses):
    """task_weights: (T,) f32.  task_losses: (T, *loss_shape) f32 (stacked).

    Returns sum_i task_weights[i] * task_losses[i] with shape loss_shape.
    """
    task_weights = jnp.asarray(task_weights, jnp.float32)
    task_losses = jnp.asarray(task_losses, jnp.float32)
    T = task_losses.shape[0]
    if task_weights.shape != (T,):
        raise ValueError(
            f"Number of task losses ({T}) must match number of task weights "
            f"({task_weights.shape[0]})")

    loss_shape = task_losses.shape[1:]
    n = int(np.prod(loss_shape)) if loss_shape else 1

    # Lane-dense slab: flatten each per-task loss, zero-pad to a multiple of 8*128.
    tile = _SUBLANES * _LANES
    n_pad = -(-n // tile) * tile
    flat = task_losses.reshape(T, n)
    if n_pad != n:
        flat = jnp.pad(flat, ((0, 0), (0, n_pad - n)))
    H = n_pad // _LANES
    x = flat.reshape(T, H, _LANES)

    th = _pick_block_rows(T, H, _LANES)
    kernel = functools.partial(_weighted_sum_kernel, num_tasks=T)

    grid_spec = pltpu.PrefetchScalarGridSpec(
        num_scalar_prefetch=0,
        grid=(H // th,),
        in_specs=[
            # task_weights: whole vector resident in SMEM.
            pl.BlockSpec(memory_space=pltpu.SMEM),
            # losses: one (T, th, 128) block per grid step.
            pl.BlockSpec((T, th, _LANES), lambda i: (0, i, 0)),
        ],
        out_specs=pl.BlockSpec((th, _LANES), lambda i: (i, 0)),
    )

    out = pl.pallas_call(
        kernel,
        grid_spec=grid_spec,
        out_shape=jax.ShapeDtypeStruct((H, _LANES), jnp.float32),
        compiler_params=pltpu.CompilerParams(
            dimension_semantics=("parallel",),
            vmem_limit_bytes=_VMEM_LIMIT_BYTES),
    )(task_weights, x)

    out = out.reshape(n_pad)[:n]
    return out.reshape(loss_shape)


def _reference(task_weights, task_losses):
    w = np.asarray(task_weights, np.float64)
    l = np.asarray(task_losses, np.float64)
    total = np.zeros(l.shape[1:], np.float64)
    for i in range(l.shape[0]):
        total += w[i] * l[i]
    return total


if __name__ == "__main__":
    key = jax.random.PRNGKey(0)
    k1, k2 = jax.random.split(key)

    num_tasks = 4
    loss_shape = (2, 16, 16)          # per-task per-element loss, e.g. (batch, H, W)
    # Stack of per-task loss tensors.
    task_losses = jax.random.normal(
        k1, (num_tasks,) + loss_shape, dtype=jnp.float32)
    # Module __init__: nn.Parameter(torch.ones(num_tasks)); perturb so the
    # weighted sum is non-trivial for the correctness check.
    task_weights = (jnp.ones((num_tasks,), jnp.float32)
                    + 0.25 * jax.random.normal(k2, (num_tasks,), dtype=jnp.float32))

    # TODO(synk): gradient/optimizer update of the learnable task_weights is
    # training machinery outside this forward-pass kernel.
    total = task_weighted_loss(task_weights, task_losses)
    jax.block_until_ready(total)

    ref = _reference(np.asarray(task_weights), np.asarray(task_losses))
    assert total.shape == loss_shape
    assert np.allclose(np.asarray(total), ref, rtol=1e-5, atol=1e-5)

    print("KERNEL_OK")
</pallas_src>

<mosaic_0001>
module attributes {stable_mosaic.version = 11 : i64} {
  func.func @_weighted_sum_kernel(%arg0: i32, %arg1: memref<4xf32, #tpu.memory_space<smem>>, %arg2: memref<4x8x128xf32, #tpu.memory_space<vmem>>, %arg3: memref<8x128xf32, #tpu.memory_space<vmem>>) attributes {dimension_semantics = [#tpu.dimension_semantics<parallel>], iteration_bounds = array<i64: 1>, scalar_prefetch = 0 : i64, scratch_operands = 0 : i64, tpu.core_type = #tpu.core_type<tc>, window_params = [{transform_indices = @transform_0, window_bounds = array<i64: 4>}, {transform_indices = @transform_1, window_bounds = array<i64: 4, 8, 128>}, {transform_indices = @transform_2, window_bounds = array<i64: 8, 128>}]} {
    %c0 = arith.constant 0 : index
    %0 = memref.load %arg1[%c0] : memref<4xf32, #tpu.memory_space<smem>>
    %c0_0 = arith.constant 0 : index
    %c0_1 = arith.constant 0 : index
    %c0_2 = arith.constant 0 : index
    %1 = vector.load %arg2[%c0_0, %c0_1, %c0_2] : memref<4x8x128xf32, #tpu.memory_space<vmem>>, vector<1x8x128xf32>
    %2 = vector.shape_cast %1 : vector<1x8x128xf32> to vector<8x128xf32>
    %3 = vector.broadcast %0 : f32 to vector<8x128xf32>
    %4 = arith.mulf %3, %2 : vector<8x128xf32>
    %c1 = arith.constant 1 : index
    %5 = memref.load %arg1[%c1] : memref<4xf32, #tpu.memory_space<smem>>
    %c1_3 = arith.constant 1 : index
    %c0_4 = arith.constant 0 : index
    %c0_5 = arith.constant 0 : index
    %6 = vector.load %arg2[%c1_3, %c0_4, %c0_5] : memref<4x8x128xf32, #tpu.memory_space<vmem>>, vector<1x8x128xf32>
    %7 = vector.shape_cast %6 : vector<1x8x128xf32> to vector<8x128xf32>
    %8 = vector.broadcast %5 : f32 to vector<8x128xf32>
    %9 = arith.mulf %8, %7 : vector<8x128xf32>
    %10 = arith.addf %4, %9 : vector<8x128xf32>
    %c2 = arith.constant 2 : index
    %11 = memref.load %arg1[%c2] : memref<4xf32, #tpu.memory_space<smem>>
    %c2_6 = arith.constant 2 : index
    %c0_7 = arith.constant 0 : index
    %c0_8 = arith.constant 0 : index
    %12 = vector.load %arg2[%c2_6, %c0_7, %c0_8] : memref<4x8x128xf32, #tpu.memory_space<vmem>>, vector<1x8x128xf32>
    %13 = vector.shape_cast %12 : vector<1x8x128xf32> to vector<8x128xf32>
    %14 = vector.broadcast %11 : f32 to vector<8x128xf32>
    %15 = arith.mulf %14, %13 : vector<8x128xf32>
    %16 = arith.addf %10, %15 : vector<8x128xf32>
    %c3 = arith.constant 3 : index
    %17 = memref.load %arg1[%c3] : memref<4xf32, #tpu.memory_space<smem>>
    %c3_9 = arith.constant 3 : index
    %c0_10 = arith.constant 0 : index
    %c0_11 = arith.constant 0 : index
    %18 = vector.load %arg2[%c3_9, %c0_10, %c0_11] : memref<4x8x128xf32, #tpu.memory_space<vmem>>, vector<1x8x128xf32>
    %19 = vector.shape_cast %18 : vector<1x8x128xf32> to vector<8x128xf32>
    %20 = vector.broadcast %17 : f32 to vector<8x128xf32>
    %21 = arith.mulf %20, %19 : vector<8x128xf32>
    %22 = arith.addf %16, %21 : vector<8x128xf32>
    %c0_12 = arith.constant 0 : index
    %c0_13 = arith.constant 0 : index
    %23 = vector.load %arg3[%c0_12, %c0_13] : memref<8x128xf32, #tpu.memory_space<vmem>>, vector<8x128xf32>
    tpu.vector_store %arg3[%c0_12, %c0_13], %22 {strides = array<i32>} : memref<8x128xf32, #tpu.memory_space<vmem>>, vector<8x128xf32>,
    return
  }
  func.func @transform_0(%arg0: i32) -> i32 {
    %c0_i32 = arith.constant 0 : i32
    %c0_i32_0 = arith.constant 0 : i32
    return %c0_i32 : i32
  }
  func.func @transform_1(%arg0: i32) -> (i32, i32, i32) {
    %c0_i32 = arith.constant 0 : i32
    %c0_i32_0 = arith.constant 0 : i32
    %c0_i32_1 = arith.constant 0 : i32
    return %c0_i32, %arg0, %c0_i32_0 : i32, i32, i32
  }
  func.func @transform_2(%arg0: i32) -> (i32, i32) {
    %c0_i32 = arith.constant 0 : i32
    %c0_i32_0 = arith.constant 0 : i32
    return %arg0, %c0_i32 : i32, i32
  }
}

</mosaic_0001>

<llo_original>
// kernel: tpu_custom_call.1
$region0: #{tpu_custom_call.1}
  #allocation0 [shape = 'u32[]', space=smem, size = 0x4, offset = 0x4, fixed_abs, tag = 'smem constant byte address 0x4 - core index']
  #allocation1 [shape = 'u32[72,128]{1,0:T(1,128)}', space=vmem, size = 0x9000, scoped, tag = 'internal scratch']
  %s0 = inlined_call_operand.hbm [shape: f32[4], index: 0, kind: input, shape index: {}]
  %s1 = inlined_call_operand.hbm [shape: f32[4,8,128], index: 1, kind: input, shape index: {}]
  %s2 = inlined_call_operand.hbm [shape: f32[8,128], index: 2, kind: output, shape index: {}]
  %s3 = sld [smem:[#allocation0]]
  $region26: #{tpu_custom_call.1} parent=0
    _
  %s5 = ssub.s32 1, %s3
  %s6 = scalar_select 0, %s5, %s3
  $region1: #{tpu_custom_call.1} parent=0
    #allocation2 [shape = 'u8[512]{0}', space=smem, size = 0x200, scoped, tag = 'input window, operand 0, single buffered']
    #allocation3 [shape = 's32[1]{0}', space=sflag, size = 0x4, scoped, tag = 'scoped memory for tpu_custom_call.1']
    #allocation4 [shape = 's32[1]{0}', space=sflag, size = 0x4, scoped, tag = 'scoped memory for tpu_custom_call.1']
    #allocation5 [shape = 's32[1]{0}', space=sflag, size = 0x4, scoped, tag = 'scoped memory for tpu_custom_call.1']
    #allocation6 [shape = 'u8[16384]{0}', space=vmem, size = 0x4000, scoped, tag = 'input window, operand 1, single buffered']
    #allocation7 [shape = 'u8[4096]{0}', space=vmem, size = 0x1000, scoped, tag = 'output window, operand 0, single buffered']
    %7 = vsyncpa [#allocation5], 0
    %8 = vsyncpa [#allocation3], 0
    %9 = vsyncpa [#allocation4], 0
    // Predicated region
    $region2: #{tpu_custom_call.1} parent=1 // pred_check
      _
    $region3: #{tpu_custom_call.1} parent=1 // pred_check_branch
      %11 = sbr.rel (0) target = $region5
    $region4: #{tpu_custom_call.1} parent=1 // pred_region
      %13 = vsyncadd [#allocation5], 0
      %s15 = sshll.u32 %s0, 4
      %s16 = int_to_ptr.hbm [resolvable:$true] %s15
      %18 = dma.hbm_to_smem %s16, 16, [#allocation2], [#allocation5]
    $region5: #{tpu_custom_call.1} parent=1 // pred_fallthru
      _
    // Predicated region
    $region6: #{tpu_custom_call.1} parent=1 // pred_check
      _
    $region7: #{tpu_custom_call.1} parent=1 // pred_check_branch
      %20 = sbr.rel (0) target = $region9
    $region8: #{tpu_custom_call.1} parent=1 // pred_region
      %22 = vsyncadd [#allocation3], 0
      %s23 = sshll.u32 %s1, 4
      %s24 = int_to_ptr.hbm [resolvable:$true] %s23
      %s25 = sshll.u32 [#allocation6], 4
      %s26 = int_to_ptr.vmem [resolvable:$true] %s25
      %31 = dma.hbm_to_vmem [thread:$0]  %s24, 512, %s26, [#allocation3], 128, 128, 8
    $region9: #{tpu_custom_call.1} parent=1 // pred_fallthru
      _
    // Predicated region
    $region10: #{tpu_custom_call.1} parent=1 // pred_check
      _
    $region11: #{tpu_custom_call.1} parent=1 // pred_check_branch
      %33 = sbr.rel (0) target = $region13
    $region12: #{tpu_custom_call.1} parent=1 // pred_region
      %35 = dma.done [#allocation5], 16
    $region13: #{tpu_custom_call.1} parent=1 // pred_fallthru
      _
    // Predicated region
    $region14: #{tpu_custom_call.1} parent=1 // pred_check
      _
    $region15: #{tpu_custom_call.1} parent=1 // pred_check_branch
      %37 = sbr.rel (0) target = $region17
    $region16: #{tpu_custom_call.1} parent=1 // pred_region
      %39 = dma.done [#allocation3], 512
    $region17: #{tpu_custom_call.1} parent=1 // pred_fallthru
      _
    %40 = sfence
    %s41 = sld [smem:[#allocation2]]
    %v42 = vld [vmem:[#allocation6] sm:$0xff]
    %v43 = vstv %s41
    %v44 = vmul.f32 %v43, %v42
    %s45 = sld [smem:[#allocation2 + $0x1]]
    %s46 = scalar_lea.vmem [#allocation6], 8
    %v47 = vld [vmem:[%s46] sm:$0xff]
    %v48 = vstv %s45
    %v49 = vmul.f32 %v48, %v47
    %v50 = vadd.f32 %v44, %v49
    %s51 = sld [smem:[#allocation2 + $0x2]]
    %s52 = scalar_lea.vmem [#allocation6], 16
    %v53 = vld [vmem:[%s52] sm:$0xff]
    %v54 = vstv %s51
    %v55 = vmul.f32 %v54, %v53
    %v56 = vadd.f32 %v50, %v55
    %s57 = sld [smem:[#allocation2 + $0x3]]
    %s58 = scalar_lea.vmem [#allocation6], 24
    %v59 = vld [vmem:[%s58] sm:$0xff]
    %v60 = vstv %s57
    %v61 = vmul.f32 %v60, %v59
    %v62 = vadd.f32 %v56, %v61
    %63 = vst [vmem:[#allocation7] sm:$0xff] %v62
    // Predicated region
    $region18: #{tpu_custom_call.1} parent=1 // pred_check
      _
    $region19: #{tpu_custom_call.1} parent=1 // pred_check_branch
      %65 = sbr.rel (0) target = $region21
    $region20: #{tpu_custom_call.1} parent=1 // pred_region
      %67 = vsyncadd [#allocation4], 0
      %s69 = sshll.u32 [#allocation7], 4
      %s70 = int_to_ptr.vmem [resolvable:$true] %s69
      %s71 = sshll.u32 %s2, 4
      %s72 = int_to_ptr.hbm [resolvable:$true] %s71
      %74 = dma.vmem_to_hbm [thread:$0]  %s70, 128, %s72, [#allocation4]
    $region21: #{tpu_custom_call.1} parent=1 // pred_fallthru
      _
    // Predicated region
    $region22: #{tpu_custom_call.1} parent=1 // pred_check
      _
    $region23: #{tpu_custom_call.1} parent=1 // pred_check_branch
      %76 = sbr.rel (0) target = $region25
    $region24: #{tpu_custom_call.1} parent=1 // pred_region
      %78 = dma.done [#allocation4], 128
    $region25: #{tpu_custom_call.1} parent=1 // pred_fallthru
      _
    %79 = vsyncpa [#allocation3], 1
    %80 = vsyncpa [#allocation4], 1
    %81 = vsyncpa [#allocation5], 1

</llo_original>
